<compile_context>
chip_gen: v7x
topology: tpu7x:2x2x1
jax: 0.10.0
libtpu: 0.0.40
codegen_flags: <defaults>
</compile_context>

<pallas_src>
import functools
import numpy as np
import jax
import jax.numpy as jnp
from jax.experimental import pallas as pl
from jax.experimental.pallas import tpu as pltpu


def _round_up(x, m):
    return ((x + m - 1) // m) * m


def make_grid(grid_dims):
    """2-D folding grid, bit-identical to the module's buffer:
       u = (arange(g0)/g0 - 0.5) tiled g1 times,
       v = (arange(g1)/g1 - 0.5) repeated g0 times (row-major of the transposed expand)."""
    g0, g1 = grid_dims
    u = np.tile(np.arange(g0, dtype=np.float64) / g0 - 0.5, g1)
    v = np.repeat(np.arange(g1, dtype=np.float64) / g1 - 0.5, g0)
    return np.stack([u, v], axis=1)                      # (g0*g1, 2)


# ----------------------------------------------------------------------------
# Kernel: one (batch, point-tile) block, feature-major (features on sublanes,
# points on lanes).  Hp is the zero-padded common hidden width (mult. of 8).
# ----------------------------------------------------------------------------
def fold_kernel(Hp, pre1_ref, cwb_ref, wslab_ref, bslab_ref, out_ref):
    f32 = jnp.float32
    cwb = cwb_ref[0]                                      # (2*Hp, 1) per-batch biases

    # Fold1 L1: grid term precomputed on host (pre1 includes b1); the broadcast
    # codeword contributes only a per-batch bias.
    h = jnp.maximum(pre1_ref[...] + cwb[0:Hp], 0.0)                          # (Hp, PT)

    # Fold1 L2.
    h = jnp.maximum(
        jnp.dot(wslab_ref[0:Hp, :], h, preferred_element_type=f32)
        + bslab_ref[0:Hp], 0.0)

    # Fold1 L3 (linear) fused into Fold2 L1:
    #   v1f.T (w3.T h + b3.T) + v1c.T cw + c1.T == M h + per-batch bias,
    # with M = v1f.T @ w3.T precomputed on host.
    h = jnp.maximum(
        jnp.dot(wslab_ref[Hp:2 * Hp, :], h, preferred_element_type=f32)
        + cwb[Hp:2 * Hp], 0.0)

    # Fold2 L2.
    h = jnp.maximum(
        jnp.dot(wslab_ref[2 * Hp:3 * Hp, :], h, preferred_element_type=f32)
        + bslab_ref[Hp:2 * Hp], 0.0)

    # Fold2 L3 (linear), output rows zero-padded 3 -> 8 for unmasked stores.
    out = (jnp.dot(wslab_ref[3 * Hp:3 * Hp + 8, :], h, preferred_element_type=f32)
           + bslab_ref[2 * Hp:2 * Hp + 8])                                   # (8, PT)
    out_ref[0] = out.astype(out_ref.dtype)


# ----------------------------------------------------------------------------
# One-time decoder construction: host preprocessing + jitted forward closure.
# ----------------------------------------------------------------------------
def make_folding_decoder(grid_dims, params, *, point_tile=512):
    """Preprocess weights ONCE (float64 numpy) and return (decode, grid_pts).
    decode(codeword): (B, K) -> (B, N, 3), matching the module's output."""
    assert point_tile % 128 == 0
    (w1g, w1c, b1, w2, b2, w3, b3, v1f, v1c, c1, v2, c2, v3, c3) = [
        np.asarray(p, dtype=np.float64) for p in params]
    grid_pts = make_grid(grid_dims)                        # (N, 2)
    N = grid_pts.shape[0]
    K = w1c.shape[0]
    H1, H2, H3, H4 = w1g.shape[1], w2.shape[1], v1f.shape[1], v2.shape[1]
    Hp = _round_up(max(H1, H2, H3, H4, 8), 8)
    PT = min(point_tile, _round_up(N, 128))
    Np = _round_up(N, PT)
    NC = Np // PT

    def pad2(a, r, c):
        out = np.zeros((r, c), np.float64)
        out[:a.shape[0], :a.shape[1]] = a
        return out

    # Batch-independent grid term of Fold1 L1 (bias b1 folded in), lane-padded.
    pre1 = pad2((grid_pts @ w1g + b1).T, Hp, Np)                              # (Hp, Np)

    # Fused Fold1-L3 / Fold2-L1 weight.
    M = v1f.T @ w3.T                                                          # (H3, H2)

    # One packed weight slab (row blocks at multiples of 8 sublanes).
    wslab = np.concatenate([
        pad2(w2.T, Hp, Hp),                   # rows [0,   Hp)     Fold1 L2
        pad2(M,    Hp, Hp),                   # rows [Hp,  2Hp)    fused layer
        pad2(v2.T, Hp, Hp),                   # rows [2Hp, 3Hp)    Fold2 L2
        pad2(v3.T, 8,  Hp),                   # rows [3Hp, 3Hp+8)  Fold2 L3
    ], axis=0)                                                                 # (3Hp+8, Hp)

    # One packed bias slab.
    bslab = np.concatenate([
        pad2(b2.reshape(-1, 1), Hp, 1),
        pad2(c2.reshape(-1, 1), Hp, 1),
        pad2(c3.reshape(-1, 1), 8, 1),
    ], axis=0)                                                                 # (2Hp+8, 1)

    # Codeword projection matrices used by the per-call wrapper (tiny matmuls).
    w1c_d = jnp.asarray(pad2(w1c, K, Hp), jnp.float32)                         # (K, Hp)
    v1c_d = jnp.asarray(pad2(v1c, K, Hp), jnp.float32)                         # (K, Hp)
    d1_d = jnp.asarray(pad2((c1 + b3 @ v1f).reshape(1, -1), 1, Hp), jnp.float32)

    pre1_d = jnp.asarray(pre1, jnp.float32)
    wslab_d = jnp.asarray(wslab, jnp.float32)
    bslab_d = jnp.asarray(bslab, jnp.float32)

    kernel = functools.partial(fold_kernel, Hp)

    @jax.jit
    def decode(codeword):
        # Guard the feature-vector contract (the module broadcasts one codeword
        # per batch element over all N points).
        assert codeword.ndim == 2 and codeword.shape[1] == K, codeword.shape
        B = codeword.shape[0]
        cw = codeword.astype(jnp.float32)

        # Per-batch bias contributions of the broadcast codeword (tiny B x K dots).
        cwb = jnp.concatenate([cw @ w1c_d, cw @ v1c_d + d1_d], axis=1)        # (B, 2Hp)
        cwb = cwb[:, :, None]                                                  # (B, 2Hp, 1)

        out_pad = pl.pallas_call(
            kernel,
            out_shape=jax.ShapeDtypeStruct((B, 8, Np), jnp.float32),
            grid_spec=pltpu.PrefetchScalarGridSpec(
                num_scalar_prefetch=0,
                grid=(NC, B),  # point tiles outer (pre1 fetched once per tile),
                               # both axes parallel -> v7x uses 2 TCs even at B=1
                in_specs=[
                    pl.BlockSpec((Hp, PT), lambda c, b: (0, c)),        # pre1
                    pl.BlockSpec((1, 2 * Hp, 1), lambda c, b: (b, 0, 0)),  # per-batch biases
                    pl.BlockSpec(wslab_d.shape, lambda c, b: (0, 0)),   # packed weights
                    pl.BlockSpec(bslab_d.shape, lambda c, b: (0, 0)),   # packed biases
                ],
                out_specs=pl.BlockSpec((1, 8, PT), lambda c, b: (b, 0, c)),
            ),
            compiler_params=pltpu.CompilerParams(
                dimension_semantics=("parallel", "parallel")),
            cost_estimate=pl.CostEstimate(
                flops=int(2 * B * Np * (3 * Hp * Hp + 8 * Hp)),
                transcendentals=0,
                bytes_accessed=int(4 * (Hp * Np + B * 2 * Hp + wslab_d.size
                                        + bslab_d.size + B * 8 * Np)),
            ),
        )(pre1_d, cwb, wslab_d, bslab_d)

        # Module contract: (B, N, 3) points-major; drop row/point padding.
        return jnp.transpose(out_pad[:, :3, :N], (0, 2, 1))

    return decode, grid_pts


# ----------------------------------------------------------------------------
# Numpy float64 golden reference (mirrors the PyTorch forward exactly,
# starting from the PointNet codeword).
# ----------------------------------------------------------------------------
def folding_reference_np(codeword, grid_pts, params):
    (w1g, w1c, b1, w2, b2, w3, b3, v1f, v1c, c1, v2, c2, v3, c3) = [
        np.asarray(p, dtype=np.float64) for p in params]
    cw = np.asarray(codeword, np.float64)                 # (B, K)
    B, K = cw.shape
    N = grid_pts.shape[0]
    g = np.broadcast_to(grid_pts[None], (B, N, 2))
    cwn = np.broadcast_to(cw[:, None, :], (B, N, K))
    f = np.concatenate([g, cwn], axis=2)
    W1 = np.concatenate([w1g, w1c], axis=0)
    f = np.maximum(f @ W1 + b1, 0.0)
    f = np.maximum(f @ w2 + b2, 0.0)
    f = f @ w3 + b3
    f = np.concatenate([f, cwn], axis=2)
    V1 = np.concatenate([v1f, v1c], axis=0)
    f = np.maximum(f @ V1 + c1, 0.0)
    f = np.maximum(f @ v2 + c2, 0.0)
    f = f @ v3 + c3
    return f                                               # (B, N, 3)


# ----------------------------------------------------------------------------
# Deterministic parameter construction (PyTorch-Linear-style uniform init).
# ----------------------------------------------------------------------------
def init_linear(key, fan_in, fan_out):
    kw, kb = jax.random.split(key)
    bound = 1.0 / np.sqrt(fan_in)
    W = np.asarray(jax.random.uniform(kw, (fan_in, fan_out), jnp.float32, -bound, bound))
    b = np.asarray(jax.random.uniform(kb, (1, fan_out), jnp.float32, -bound, bound))
    return W, b


def make_weights(key, K, H):
    ks = jax.random.split(key, 6)
    # Fold1: Folding1_dims = (2 + K, H, H, 3)
    W1, b1 = init_linear(ks[0], 2 + K, H)
    w1g, w1c = W1[:2], W1[2:]
    w2, b2 = init_linear(ks[1], H, H)
    w3, b3 = init_linear(ks[2], H, 3)
    # Fold2: Folding2_dims = (3 + K, H, H, 3)
    V1, c1 = init_linear(ks[3], 3 + K, H)
    v1f, v1c = V1[:3], V1[3:]
    v2, c2 = init_linear(ks[4], H, H)
    v3, c3 = init_linear(ks[5], H, 3)
    return [w1g, w1c, b1, w2, b2, w3, b3, v1f, v1c, c1, v2, c2, v3, c3]


if __name__ == "__main__":
    # Small shapes consistent with the module: codeword K=32, hidden=32,
    # grid_dims=(45,45) -> N=2025 points (padded to 2048 inside the decoder).
    B, K, H = 2, 32, 32
    grid_dims = (45, 45)

    key = jax.random.PRNGKey(0)
    k_cw, k_w = jax.random.split(key)
    params = make_weights(k_w, K, H)
    codeword = jax.random.normal(k_cw, (B, K), dtype=jnp.float32)
    # TODO(synk): the PointNetVanilla encoder (MLP + max-pool + FC) that produces
    # the (B, K) codeword from the raw point cloud is not part of this kernel;
    # the codeword is consumed directly.

    # Decoder construction (host preprocessing + weight upload) happens ONCE.
    decode, grid_pts = make_folding_decoder(grid_dims, params, point_tile=512)

    out = jax.block_until_ready(decode(codeword))
    N = grid_dims[0] * grid_dims[1]
    assert out.shape == (B, N, 3), out.shape

    ref = folding_reference_np(np.asarray(codeword), grid_pts, params)
    # The concat handling (weight split / per-batch bias) and the Fold1-L3 /
    # Fold2-L1 fusion are algebraically exact; the tolerance only covers MXU
    # f32 matmul rounding vs. this float64 numpy golden.
    np.testing.assert_allclose(np.asarray(out, np.float64), ref,
                               rtol=5e-4, atol=5e-4)
    print("KERNEL_OK")
</pallas_src>

<mosaic_0001>
module attributes {stable_mosaic.version = 11 : i64} {
  func.func @fold_kernel(%arg0: i32, %arg1: i32, %arg2: memref<32x512xf32, #tpu.memory_space<vmem>>, %arg3: memref<1x64x1xf32, #tpu.memory_space<vmem>>, %arg4: memref<104x32xf32, #tpu.memory_space<vmem>>, %arg5: memref<72x1xf32, #tpu.memory_space<vmem>>, %arg6: memref<1x8x512xf32, #tpu.memory_space<vmem>>) attributes {dimension_semantics = [#tpu.dimension_semantics<parallel>, #tpu.dimension_semantics<parallel>], iteration_bounds = array<i64: 4, 2>, scalar_prefetch = 0 : i64, scratch_operands = 0 : i64, tpu.core_type = #tpu.core_type<tc>, window_params = [{transform_indices = @transform_0, window_bounds = array<i64: 32, 512>}, {transform_indices = @transform_1, window_bounds = array<i64: 1, 64, 1>}, {pipeline_mode = #tpu.pipeline_mode<synchronous>, transform_indices = @transform_2, window_bounds = array<i64: 104, 32>}, {pipeline_mode = #tpu.pipeline_mode<synchronous>, transform_indices = @transform_3, window_bounds = array<i64: 72, 1>}, {transform_indices = @transform_4, window_bounds = array<i64: 1, 8, 512>}]} {
    %c0 = arith.constant 0 : index
    %c0_0 = arith.constant 0 : index
    %c0_1 = arith.constant 0 : index
    %0 = vector.load %arg3[%c0, %c0_0, %c0_1] : memref<1x64x1xf32, #tpu.memory_space<vmem>>, vector<1x64x1xf32>
    %1 = vector.shape_cast %0 : vector<1x64x1xf32> to vector<64x1xf32>
    %c0_2 = arith.constant 0 : index
    %c0_3 = arith.constant 0 : index
    %2 = vector.load %arg2[%c0_2, %c0_3] : memref<32x512xf32, #tpu.memory_space<vmem>>, vector<32x512xf32>
    %3 = vector.extract_strided_slice %1 {offsets = [0, 0], sizes = [32, 1], strides = [1, 1]} : vector<64x1xf32> to vector<32x1xf32>
    %4 = vector.broadcast %3 : vector<32x1xf32> to vector<32x512xf32>
    %5 = arith.addf %2, %4 : vector<32x512xf32>
    %cst = arith.constant 0.000000e+00 : f32
    %6 = vector.broadcast %cst : f32 to vector<32x512xf32>
    %7 = arith.maximumf %5, %6 : vector<32x512xf32>
    %c0_4 = arith.constant 0 : index
    %c0_5 = arith.constant 0 : index
    %8 = vector.load %arg4[%c0_4, %c0_5] : memref<104x32xf32, #tpu.memory_space<vmem>>, vector<32x32xf32>
    %cst_6 = arith.constant dense<0.000000e+00> : vector<32x512xf32>
    %9 = tpu.matmul %8, %7, %cst_6 {dimension_numbers = #tpu.dot_dimension_numbers<[1], [0], [0], [1], [0, 0, 1, 1], [], []>} : vector<32x32xf32>, vector<32x512xf32>, vector<32x512xf32> -> vector<32x512xf32>
    %c0_7 = arith.constant 0 : index
    %c0_8 = arith.constant 0 : index
    %10 = vector.load %arg5[%c0_7, %c0_8] : memref<72x1xf32, #tpu.memory_space<vmem>>, vector<32x1xf32>
    %11 = vector.broadcast %10 : vector<32x1xf32> to vector<32x512xf32>
    %12 = arith.addf %9, %11 : vector<32x512xf32>
    %cst_9 = arith.constant 0.000000e+00 : f32
    %13 = vector.broadcast %cst_9 : f32 to vector<32x512xf32>
    %14 = arith.maximumf %12, %13 : vector<32x512xf32>
    %c32 = arith.constant 32 : index
    %c0_10 = arith.constant 0 : index
    %15 = vector.load %arg4[%c32, %c0_10] : memref<104x32xf32, #tpu.memory_space<vmem>>, vector<32x32xf32>
    %cst_11 = arith.constant dense<0.000000e+00> : vector<32x512xf32>
    %16 = tpu.matmul %15, %14, %cst_11 {dimension_numbers = #tpu.dot_dimension_numbers<[1], [0], [0], [1], [0, 0, 1, 1], [], []>} : vector<32x32xf32>, vector<32x512xf32>, vector<32x512xf32> -> vector<32x512xf32>
    %17 = vector.extract_strided_slice %1 {offsets = [32, 0], sizes = [32, 1], strides = [1, 1]} : vector<64x1xf32> to vector<32x1xf32>
    %18 = vector.broadcast %17 : vector<32x1xf32> to vector<32x512xf32>
    %19 = arith.addf %16, %18 : vector<32x512xf32>
    %cst_12 = arith.constant 0.000000e+00 : f32
    %20 = vector.broadcast %cst_12 : f32 to vector<32x512xf32>
    %21 = arith.maximumf %19, %20 : vector<32x512xf32>
    %c64 = arith.constant 64 : index
    %c0_13 = arith.constant 0 : index
    %22 = vector.load %arg4[%c64, %c0_13] : memref<104x32xf32, #tpu.memory_space<vmem>>, vector<32x32xf32>
    %cst_14 = arith.constant dense<0.000000e+00> : vector<32x512xf32>
    %23 = tpu.matmul %22, %21, %cst_14 {dimension_numbers = #tpu.dot_dimension_numbers<[1], [0], [0], [1], [0, 0, 1, 1], [], []>} : vector<32x32xf32>, vector<32x512xf32>, vector<32x512xf32> -> vector<32x512xf32>
    %c32_15 = arith.constant 32 : index
    %c0_16 = arith.constant 0 : index
    %24 = vector.load %arg5[%c32_15, %c0_16] : memref<72x1xf32, #tpu.memory_space<vmem>>, vector<32x1xf32>
    %25 = vector.broadcast %24 : vector<32x1xf32> to vector<32x512xf32>
    %26 = arith.addf %23, %25 : vector<32x512xf32>
    %cst_17 = arith.constant 0.000000e+00 : f32
    %27 = vector.broadcast %cst_17 : f32 to vector<32x512xf32>
    %28 = arith.maximumf %26, %27 : vector<32x512xf32>
    %c96 = arith.constant 96 : index
    %c0_18 = arith.constant 0 : index
    %29 = vector.load %arg4[%c96, %c0_18] : memref<104x32xf32, #tpu.memory_space<vmem>>, vector<8x32xf32>
    %cst_19 = arith.constant dense<0.000000e+00> : vector<8x512xf32>
    %30 = tpu.matmul %29, %28, %cst_19 {dimension_numbers = #tpu.dot_dimension_numbers<[1], [0], [0], [1], [0, 0, 1, 1], [], []>} : vector<8x32xf32>, vector<32x512xf32>, vector<8x512xf32> -> vector<8x512xf32>
    %c64_20 = arith.constant 64 : index
    %c0_21 = arith.constant 0 : index
    %31 = vector.load %arg5[%c64_20, %c0_21] : memref<72x1xf32, #tpu.memory_space<vmem>>, vector<8x1xf32>
    %32 = vector.broadcast %31 : vector<8x1xf32> to vector<8x512xf32>
    %33 = arith.addf %30, %32 : vector<8x512xf32>
    %c0_22 = arith.constant 0 : index
    %c0_23 = arith.constant 0 : index
    %c0_24 = arith.constant 0 : index
    %34 = vector.load %arg6[%c0_22, %c0_23, %c0_24] : memref<1x8x512xf32, #tpu.memory_space<vmem>>, vector<1x8x512xf32>
    %35 = vector.shape_cast %34 : vector<1x8x512xf32> to vector<8x512xf32>
    %36 = vector.shape_cast %33 : vector<8x512xf32> to vector<1x8x512xf32>
    tpu.vector_store %arg6[%c0_22, %c0_23, %c0_24], %36 {strides = array<i32>} : memref<1x8x512xf32, #tpu.memory_space<vmem>>, vector<1x8x512xf32>,
    return
  }
  func.func @transform_0(%arg0: i32, %arg1: i32) -> (i32, i32) {
    %c0_i32 = arith.constant 0 : i32
    %c0_i32_0 = arith.constant 0 : i32
    return %c0_i32, %arg0 : i32, i32
  }
  func.func @transform_1(%arg0: i32, %arg1: i32) -> (i32, i32, i32) {
    %c0_i32 = arith.constant 0 : i32
    %c0_i32_0 = arith.constant 0 : i32
    %c0_i32_1 = arith.constant 0 : i32
    return %arg1, %c0_i32, %c0_i32_0 : i32, i32, i32
  }
  func.func @transform_2(%arg0: i32, %arg1: i32) -> (i32, i32) {
    %c0_i32 = arith.constant 0 : i32
    %c0_i32_0 = arith.constant 0 : i32
    %c0_i32_1 = arith.constant 0 : i32
    return %c0_i32, %c0_i32_0 : i32, i32
  }
  func.func @transform_3(%arg0: i32, %arg1: i32) -> (i32, i32) {
    %c0_i32 = arith.constant 0 : i32
    %c0_i32_0 = arith.constant 0 : i32
    %c0_i32_1 = arith.constant 0 : i32
    return %c0_i32, %c0_i32_0 : i32, i32
  }
  func.func @transform_4(%arg0: i32, %arg1: i32) -> (i32, i32, i32) {
    %c0_i32 = arith.constant 0 : i32
    %c0_i32_0 = arith.constant 0 : i32
    return %arg1, %c0_i32, %arg0 : i32, i32, i32
  }
}

</mosaic_0001>

<llo_original>
// kernel: decode.1
$region0: #{decode.1}
  #allocation0 [shape = 'u32[]', space=smem, size = 0x4, offset = 0x4, fixed_abs, tag = 'smem constant byte address 0x4 - core index']
  #allocation1 [shape = 'u32[144,128]{1,0:T(1,128)}', space=vmem, size = 0x12000, scoped, tag = 'internal scratch']
  %s0 = inlined_call_operand.hbm [shape: f32[32,2048], index: 0, kind: input, shape index: {}]
  %s1 = inlined_call_operand.vmem [shape: f32[2,64,1], index: 1, kind: input, shape index: {}]
  %s2 = inlined_call_operand.vmem [shape: f32[104,32], index: 2, kind: input, shape index: {}]
  %s3 = inlined_call_operand.vmem [shape: f32[72,1], index: 3, kind: input, shape index: {}]
  %s4 = inlined_call_operand.vmem [shape: f32[2,8,2048], index: 4, kind: output, shape index: {}]
  %s5 = sld [smem:[#allocation0]]
  $region53: #{decode.1} parent=0
    _
  %s7 = ssub.s32 1, %s5
  %s8 = scalar_select 0, %s7, %s5
  $region1: #{decode.1} parent=0
    #allocation2 [shape = 'u8[131072]{0}', space=vmem, size = 0x20000, scoped, tag = 'input window, operand 0']
    #allocation3 [shape = 's32[2]{0}', space=sflag, size = 0x8, scoped, tag = 'scoped memory for decode.1']
    %9 = vsyncpa [#allocation3], 0
    %s10 = scalar_lea.sflag [#allocation3], 1
    %11 = vsyncpa %s10, 0
    loop: start=0, step=1, limit=10
    $region2: #{decode.1} parent=1 // loop_pre_header
      _
    $region3: #{decode.1} parent=1 // loop_header
      %s13 = sphi 0, %s17
      %p14 = scmp.ge.s32.totalorder %s13, 10
      %s20 = sphi 0, %s32
      %s21 = sphi 0, %s28
      %s22 = sphi 0, %s20
      %s23 = sphi 0, %s21
      %s24 = sphi 0, %s22
      %s25 = sphi 0, %s23
      %s35 = sphi 0, %s37
      %s38 = sphi 0, %s35
      %s39 = sphi 0, %s38
      %s55 = sphi 0, %s39
      %s61 = sphi 0, %s63
      %s64 = sphi 0, %s61
      %s65 = sphi 0, %s64
      %s81 = sphi 0, %s65
      %s85 = sphi 0, %s85
      %s87 = sphi 0, %s85
      %s88 = sphi 0, %s87
      %s102 = sphi 0, %s88
      %s106 = sphi 0, %s106
      %s108 = sphi 0, %s106
      %s109 = sphi 0, %s108
      %s123 = sphi 0, %s109
      %s131 = sphi 0, %s133
      %s134 = sphi 0, %s131
      %s135 = sphi 0, %s134
      %s151 = sphi 0, %s135
    $region4: #{decode.1} parent=1 // loop_header_branch
      %16 = sbr.rel (%p14) target = $region8
    $region5: #{decode.1} parent=1 // loop_body
      %s18 = ssub.s32 %s13, 1
      %s19 = ssub.s32 %s13, 2
      %s26 = sadd.s32 1, %s21
      %p27 = scmp.ge.s32.totalorder %s26, 2
      %s28 = scalar_select %p27, 0, %s26
      %s29 = sadd.s32 1, %s20
      %s30 = scalar_select %p27, %s29, %s20
      %p31 = scmp.ge.s32.totalorder %s30, 4
      %s32 = scalar_select %p31, 0, %s30
      %s33 = ssub.s32 %s20, %s32
      %p34 = scmp.eq.s32.totalorder %s33, 0
      %s36 = sadd.s32 %s35, 1
      %s37 = scalar_select %p34, %s35, %s36
      %p40 = pneg %p34
      %p41 = scmp.eq.s32.totalorder %s13, 7
      %p42 = por %p40, %p41
      %p43 = scmp.ne.s32.totalorder %s35, %s38
      %p44 = scmp.eq.s32.totalorder %s13, 0
      %p45 = por %p43, %p44
      %p46 = scmp.ne.s32.totalorder %s35, %s38
      %p47 = scmp.eq.s32.totalorder %s18, 7
      %p48 = por %p46, %p47
      %p49 = scmp.ne.s32.totalorder %s38, %s39
      %p50 = scmp.eq.s32.totalorder %s18, 0
      %p51 = por %p49, %p50
      %p52 = scmp.ne.s32.totalorder %s38, %s39
      %p53 = scmp.eq.s32.totalorder %s19, 7
      %p54 = por %p52, %p53
      %p56 = scmp.ne.s32.totalorder %s39, %s55
      %p57 = scmp.eq.s32.totalorder %s19, 0
      %p58 = por %p56, %p57
      %s59 = ssub.s32 %s21, %s28
      %p60 = scmp.eq.s32.totalorder %s59, 0
      %s62 = sadd.s32 %s61, 1
      %s63 = scalar_select %p60, %s61, %s62
      %p66 = pneg %p60
      %p67 = scmp.eq.s32.totalorder %s13, 7
      %p68 = por %p66, %p67
      %p69 = scmp.ne.s32.totalorder %s61, %s64
      %p70 = scmp.eq.s32.totalorder %s13, 0
      %p71 = por %p69, %p70
      %p72 = scmp.ne.s32.totalorder %s61, %s64
      %p73 = scmp.eq.s32.totalorder %s18, 7
      %p74 = por %p72, %p73
      %p75 = scmp.ne.s32.totalorder %s64, %s65
      %p76 = scmp.eq.s32.totalorder %s18, 0
      %p77 = por %p75, %p76
      %p78 = scmp.ne.s32.totalorder %s64, %s65
      %p79 = scmp.eq.s32.totalorder %s19, 7
      %p80 = por %p78, %p79
      %p82 = scmp.ne.s32.totalorder %s65, %s81
      %p83 = scmp.eq.s32.totalorder %s19, 0
      %p84 = por %p82, %p83
      %s86 = sadd.s32 %s85, 1
      %p89 = scmp.eq.s32.totalorder %s13, 7
      %p90 = scmp.ne.s32.totalorder %s85, %s87
      %p91 = scmp.eq.s32.totalorder %s13, 0
      %p92 = por %p90, %p91
      %p93 = scmp.ne.s32.totalorder %s85, %s87
      %p94 = scmp.eq.s32.totalorder %s18, 7
      %p95 = por %p93, %p94
      %p96 = scmp.ne.s32.totalorder %s87, %s88
      %p97 = scmp.eq.s32.totalorder %s18, 0
      %p98 = por %p96, %p97
      %p99 = scmp.ne.s32.totalorder %s87, %s88
      %p100 = scmp.eq.s32.totalorder %s19, 7
      %p101 = por %p99, %p100
      %p103 = scmp.ne.s32.totalorder %s88, %s102
      %p104 = scmp.eq.s32.totalorder %s19, 0
      %p105 = por %p103, %p104
      %s107 = sadd.s32 %s106, 1
      %p110 = scmp.eq.s32.totalorder %s13, 7
      %p111 = scmp.ne.s32.totalorder %s106, %s108
      %p112 = scmp.eq.s32.totalorder %s13, 0
      %p113 = por %p111, %p112
      %p114 = scmp.ne.s32.totalorder %s106, %s108
      %p115 = scmp.eq.s32.totalorder %s18, 7
      %p116 = por %p114, %p115
      %p117 = scmp.ne.s32.totalorder %s108, %s109
      %p118 = scmp.eq.s32.totalorder %s18, 0
      %p119 = por %p117, %p118
      %p120 = scmp.ne.s32.totalorder %s108, %s109
      %p121 = scmp.eq.s32.totalorder %s19, 7
      %p122 = por %p120, %p121
      %p124 = scmp.ne.s32.totalorder %s109, %s123
      %p125 = scmp.eq.s32.totalorder %s19, 0
      %p126 = por %p124, %p125
      %s127 = ssub.s32 %s21, %s28
      %s128 = ssub.s32 %s20, %s32
      %s129 = sor.u32 %s127, %s128
      %p130 = scmp.eq.s32.totalorder %s129, 0
      %s132 = sadd.s32 %s131, 1
      %s133 = scalar_select %p130, %s131, %s132
      %p136 = pneg %p130
      %p137 = scmp.eq.s32.totalorder %s13, 7
      %p138 = por %p136, %p137
      %p139 = scmp.ne.s32.totalorder %s131, %s134
      %p140 = scmp.eq.s32.totalorder %s13, 0
      %p141 = por %p139, %p140
      %p142 = scmp.ne.s32.totalorder %s131, %s134
      %p143 = scmp.eq.s32.totalorder %s18, 7
      %p144 = por %p142, %p143
      %p145 = scmp.ne.s32.totalorder %s134, %s135
      %p146 = scmp.eq.s32.totalorder %s18, 0
      %p147 = por %p145, %p146
      %p148 = scmp.ne.s32.totalorder %s134, %s135
      %p149 = scmp.eq.s32.totalorder %s19, 7
      %p150 = por %p148, %p149
      %p152 = scmp.ne.s32.totalorder %s135, %s151
      %p153 = scmp.eq.s32.totalorder %s19, 0
      %p154 = por %p152, %p153
      %p155 = scmp.le.s32.totalorder 1, %s13
      %p156 = scmp.lt.s32.totalorder %s13, 9
      %p157 = pnand %p155, %p156
      %p158 = pneg %p157
      // Predicated region
      $region9: #{decode.1} parent=5 // pred_check
        _
      $region10: #{decode.1} parent=5 // pred_check_branch
        %160 = sbr.rel (%p157) target = $region12
      $region11: #{decode.1} parent=5 // pred_region
        %s161 = ssub.s32 %s13, 1
        // Predicated region
        $region13: #{decode.1} parent=11 // pred_check
          %p162 = pneg %p98
        $region14: #{decode.1} parent=11 // pred_check_branch
          %164 = sbr.rel (%p162) target = $region16
        $region15: #{decode.1} parent=11 // pred_region
          _
        $region16: #{decode.1} parent=11 // pred_fallthru
          _
        // Predicated region
        $region17: #{decode.1} parent=11 // pred_check
          %p165 = pneg %p119
        $region18: #{decode.1} parent=11 // pred_check_branch
          %167 = sbr.rel (%p165) target = $region20
        $region19: #{decode.1} parent=11 // pred_region
          _
        $region20: #{decode.1} parent=11 // pred_fallthru
          _
      $region12: #{decode.1} parent=5 // pred_fallthru
        _
      %p168 = scmp.lt.s32.totalorder %s13, 8
      // Predicated region
      $region21: #{decode.1} parent=5 // pred_check
        %p169 = pneg %p168
      $region22: #{decode.1} parent=5 // pred_check_branch
        %171 = sbr.rel (%p169) target = $region24
      $region23: #{decode.1} parent=5 // pred_region
        // Predicated region
        $region25: #{decode.1} parent=23 // pred_check
          %p172 = pneg %p45
        $region26: #{decode.1} parent=23 // pred_check_branch
          %174 = sbr.rel (%p172) target = $region28
        $region27: #{decode.1} parent=23 // pred_region
          %s175 = sand.u32 %s35, 1
          %s176 = scalar_lea.sflag [#allocation3], %s175
          %s177 = sand.u32 %s35, 1
          %s178 = smul.addr %s177, 128
          %s179 = scalar_lea.vmem [#allocation2], %s178
          %s180 = smul.u32 4, %s20
          %s182 = ssub.s32 2048, 2048
          %183 = vsyncadd %s176, %s182
          %s184 = smul.addr %s180, 128
          %s185 = scalar_lea.hbm %s0, %s184
          %s186 = sshll.u32 %s179, 4
          %s187 = int_to_ptr.vmem [resolvable:$true] %s186
          %192 = dma.hbm_to_vmem [thread:$0]  %s185, 2048, %s187, %s176, 2048, 512, 32
        $region28: #{decode.1} parent=23 // pred_fallthru
          _
        // Predicated region
        $region29: #{decode.1} parent=23 // pred_check
          %p193 = pneg %p71
        $region30: #{decode.1} parent=23 // pred_check_branch
          %195 = sbr.rel (%p193) target = $region32
        $region31: #{decode.1} parent=23 // pred_region
          %p196 = scmp.lt.s32.totalorder %s21, 1
          %s197 = scalar_select %p196, %s21, 1
          %s198 = smul.addr %s197, 8
          %s199 = smul.addr %s198, 8
          %s200 = scalar_lea.vmem %s1, %s199
        $region32: #{decode.1} parent=23 // pred_fallthru
          _
      $region24: #{decode.1} parent=5 // pred_fallthru
        _
      %p201 = scmp.le.s32.totalorder 1, %s13
      %p202 = scmp.lt.s32.totalorder %s13, 9
      %p203 = pnand %p201, %p202
      %p204 = pneg %p203
      // Predicated region
      $region33: #{decode.1} parent=5 // pred_check
        _
      $region34: #{decode.1} parent=5 // pred_check_branch
        %206 = sbr.rel (%p203) target = $region36
      $region35: #{decode.1} parent=5 // pred_region
        %s207 = ssub.s32 %s13, 1
        %s208 = sand.u32 %s38, 1
        %s209 = scalar_lea.sflag [#allocation3], %s208
        %s210 = sand.u32 %s38, 1
        %s211 = smul.addr %s210, 128
        %s212 = scalar_lea.vmem [#allocation2], %s211
        // Predicated region
        $region37: #{decode.1} parent=35 // pred_check
          %p213 = pneg %p51
        $region38: #{decode.1} parent=35 // pred_check_branch
          %215 = sbr.rel (%p213) target = $region40
        $region39: #{decode.1} parent=35 // pred_region
          %216 = dma.done %s209, 2048
        $region40: #{decode.1} parent=35 // pred_fallthru
          _
        %s217 = sand.u32 %s38, 1
        %s218 = scalar_lea.sflag [#allocation3], %s217
        %s219 = sand.u32 %s38, 1
        %s220 = smul.addr %s219, 128
        %s221 = scalar_lea.vmem [#allocation2], %s220
        %p222 = pneg %p51
        %p223 = pneg %p48
        %p224 = scmp.lt.s32.totalorder %s23, 1
        %s225 = scalar_select %p224, %s23, 1
        %s226 = smul.addr %s225, 8
        %s227 = smul.addr %s226, 8
        %s228 = scalar_lea.vmem %s1, %s227
        %p229 = pneg %p77
        %p230 = pneg %p74
        %p231 = pneg %p98
        %p232 = pneg %p95
        %p233 = pneg %p119
        %p234 = pneg %p116
        %p235 = pneg %p147
        %p236 = pneg %p144
        %s237 = smul.u32 4, %s22
        %p238 = scmp.lt.s32.totalorder %s23, 1
        %s239 = scalar_select %p238, %s23, 1
        %p240 = scmp.lt.s32.totalorder %s237, 15
        %s241 = scalar_select %p240, %s237, 15
        %s242 = smul.addr %s239, 16
        %s243 = sadd.s32 %s241, %s242
        %s244 = smul.addr %s243, 8
        %s245 = scalar_lea.vmem %s4, %s244
        %s246 = smul.u32 4, %s22
        %p247 = scmp.lt.s32.totalorder %s23, 1
        %s248 = scalar_select %p247, %s23, 1
        %s249 = smul.addr %s248, 8
        %s250 = smul.addr %s249, 8
        %s251 = scalar_lea.vmem %s1, %s250
        %s252 = smul.u32 4, %s22
        %p253 = scmp.lt.s32.totalorder %s23, 1
        %s254 = scalar_select %p253, %s23, 1
        %p255 = scmp.lt.s32.totalorder %s252, 15
        %s256 = scalar_select %p255, %s252, 15
        %s257 = smul.addr %s254, 16
        %s258 = sadd.s32 %s256, %s257
        %s259 = smul.addr %s258, 8
        %s260 = scalar_lea.vmem %s4, %s259
        %s261 = smul.u32 4, %s22
        %v262 = vld [vmem:[%s251] sm:$0xff]
        %v263 = vld [vmem:[%s251 + $0x8] sm:$0xff]
        %v264 = vld [vmem:[%s251 + $0x10] sm:$0xff]
        %v265 = vld [vmem:[%s251 + $0x18] sm:$0xff]
        %v266 = vld [vmem:[%s251 + $0x20] sm:$0xff]
        %v267 = vld [vmem:[%s251 + $0x28] sm:$0xff]
        %v268 = vld [vmem:[%s251 + $0x30] sm:$0xff]
        %v269 = vld [vmem:[%s251 + $0x38] sm:$0xff]
        %v270 = vld [vmem:[%s212] sm:$0xff]
        %v271 = vld [vmem:[%s212 + $0x8] sm:$0xff]
        %v272 = vld [vmem:[%s212 + $0x10] sm:$0xff]
        %v273 = vld [vmem:[%s212 + $0x18] sm:$0xff]
        %v274 = vld [vmem:[%s212 + $0x20] sm:$0xff]
        %v275 = vld [vmem:[%s212 + $0x28] sm:$0xff]
        %v276 = vld [vmem:[%s212 + $0x30] sm:$0xff]
        %v277 = vld [vmem:[%s212 + $0x38] sm:$0xff]
        %v278 = vld [vmem:[%s212 + $0x40] sm:$0xff]
        %v279 = vld [vmem:[%s212 + $0x48] sm:$0xff]
        %v280 = vld [vmem:[%s212 + $0x50] sm:$0xff]
        %v281 = vld [vmem:[%s212 + $0x58] sm:$0xff]
        %v282 = vld [vmem:[%s212 + $0x60] sm:$0xff]
        %v283 = vld [vmem:[%s212 + $0x68] sm:$0xff]
        %v284 = vld [vmem:[%s212 + $0x70] sm:$0xff]
        %v285 = vld [vmem:[%s212 + $0x78] sm:$0xff]
        %287 = vset.pattern.permute.xlu0 0
        %288 = vperm.xlu0 %287, %v262
        %v289 = vpop.permute.xlu0 %288
        %292 = vset.pattern.permute.xlu0 0
        %293 = vperm.xlu0 %292, %v263
        %v294 = vpop.permute.xlu0 %293
        %297 = vset.pattern.permute.xlu0 0
        %298 = vperm.xlu0 %297, %v264
        %v299 = vpop.permute.xlu0 %298
        %302 = vset.pattern.permute.xlu0 0
        %303 = vperm.xlu0 %302, %v265
        %v304 = vpop.permute.xlu0 %303
        %v306 = vadd.f32 %v270, %v289
        %v307 = vadd.f32 %v271, %v289
        %v308 = vadd.f32 %v272, %v289
        %v309 = vadd.f32 %v273, %v289
        %v310 = vadd.f32 %v274, %v294
        %v311 = vadd.f32 %v275, %v294
        %v312 = vadd.f32 %v276, %v294
        %v313 = vadd.f32 %v277, %v294
        %v314 = vadd.f32 %v278, %v299
        %v315 = vadd.f32 %v279, %v299
        %v316 = vadd.f32 %v280, %v299
        %v317 = vadd.f32 %v281, %v299
        %v318 = vadd.f32 %v282, %v304
        %v319 = vadd.f32 %v283, %v304
        %v320 = vadd.f32 %v284, %v304
        %v321 = vadd.f32 %v285, %v304
        %v322 = vmax.f32 %v306, 0.0
        %v323 = vmax.f32 %v307, 0.0
        %v324 = vmax.f32 %v308, 0.0
        %v325 = vmax.f32 %v309, 0.0
        %v326 = vmax.f32 %v310, 0.0
        %v327 = vmax.f32 %v311, 0.0
        %v328 = vmax.f32 %v312, 0.0
        %v329 = vmax.f32 %v313, 0.0
        %v330 = vmax.f32 %v314, 0.0
        %v331 = vmax.f32 %v315, 0.0
        %v332 = vmax.f32 %v316, 0.0
        %v333 = vmax.f32 %v317, 0.0
        %v334 = vmax.f32 %v318, 0.0
        %v335 = vmax.f32 %v319, 0.0
        %v336 = vmax.f32 %v320, 0.0
        %v337 = vmax.f32 %v321, 0.0
        %v338 = vld [vmem:[%s2] sm:$0xff]
        %v339 = vld [vmem:[%s2 + $0x8] sm:$0xff]
        %v340 = vld [vmem:[%s2 + $0x10] sm:$0xff]
        %v341 = vld [vmem:[%s2 + $0x18] sm:$0xff]
        %v342 = vld [vmem:[%s3] sm:$0xff]
        %v343 = vld [vmem:[%s3 + $0x8] sm:$0xff]
        %v344 = vld [vmem:[%s3 + $0x10] sm:$0xff]
        %v345 = vld [vmem:[%s3 + $0x18] sm:$0xff]
        %347 = vset.pattern.permute.xlu0 0
        %348 = vperm.xlu0 %347, %v342
        %v349 = vpop.permute.xlu0 %348
        %352 = vset.pattern.permute.xlu0 0
        %353 = vperm.xlu0 %352, %v343
        %v354 = vpop.permute.xlu0 %353
        %357 = vset.pattern.permute.xlu0 0
        %358 = vperm.xlu0 %357, %v344
        %v359 = vpop.permute.xlu0 %358
        %362 = vset.pattern.permute.xlu0 0
        %363 = vperm.xlu0 %362, %v345
        %v364 = vpop.permute.xlu0 %363
        %vm366 = vcmask 261120
        %v368 = vsel %vm366, %v338, 0
        %v371 = vsel %vm366, %v339, 0
        %v374 = vsel %vm366, %v340, 0
        %v377 = vsel %vm366, %v341, 0
        %379 = vmatprep.subr.mxu0 %v323
        %380 = vmatpush1.msra.mxu0 %v322
        %381 = vmatprep.subr.mxu0 %v327
        %382 = vmatpush1.msra.mxu0 %v326
        %383 = vmatprep.subr.mxu0 %v331
        %384 = vmatpush1.msra.mxu0 %v330
        %385 = vmatprep.subr.mxu0 %v335
        %386 = vmatpush1.msra.mxu0 %v334
        %387 = vmatprep.subr.mxu0 0.0
        %388 = vmatpush1.msra.mxu0 0.0
        %389 = vmatprep.subr.mxu0 0.0
        %390 = vmatpush1.msra.mxu0 0.0
        %391 = vmatprep.subr.mxu0 0.0
        %392 = vmatpush1.msra.mxu0 0.0
        %393 = vmatprep.subr.mxu0 0.0
        %394 = vmatpush1.msra.mxu0 0.0
        %395 = vmatprep.subr.mxu0 0.0
        %396 = vmatpush1.msra.mxu0 0.0
        %397 = vmatprep.subr.mxu0 0.0
        %398 = vmatpush1.msra.mxu0 0.0
        %399 = vmatprep.subr.mxu0 0.0
        %400 = vmatpush1.msra.mxu0 0.0
        %401 = vmatprep.subr.mxu0 0.0
        %402 = vmatpush1.msra.mxu0 0.0
        %403 = vmatprep.subr.mxu0 0.0
        %404 = vmatpush1.msra.mxu0 0.0
        %405 = vmatprep.subr.mxu0 0.0
        %406 = vmatpush1.msra.mxu0 0.0
        %407 = vmatprep.subr.mxu0 0.0
        %408 = vmatpush1.msra.mxu0 0.0
        %409 = vmatprep.subr.mxu0 0.0
        %410 = vmatpush1.msra.mxu0 0.0
        %411 = vmatprep.subr.mxu0 0.0
        %412 = vmatpush1.msra.mxu0 0.0
        %413 = vmatprep.subr.mxu0 0.0
        %414 = vmatpush1.msra.mxu0 0.0
        %415 = vmatprep.subr.mxu0 0.0
        %416 = vmatpush1.msra.mxu0 0.0
        %417 = vmatprep.subr.mxu0 0.0
        %418 = vmatpush1.msra.mxu0 0.0
        %419 = vmatprep.subr.mxu0 0.0
        %420 = vmatpush1.msra.mxu0 0.0
        %421 = vmatprep.subr.mxu0 0.0
        %422 = vmatpush1.msra.mxu0 0.0
        %423 = vmatprep.subr.mxu0 0.0
        %424 = vmatpush1.msra.mxu0 0.0
        %425 = vmatprep.subr.mxu0 0.0
        %426 = vmatpush1.msra.mxu0 0.0
        %427 = vmatprep.subr.mxu0 0.0
        %428 = vmatpush1.msra.mxu0 0.0
        %429 = vmatprep.subr.mxu0 0.0
        %430 = vmatpush1.msra.mxu0 0.0
        %431 = vmatprep.subr.mxu0 0.0
        %432 = vmatpush1.msra.mxu0 0.0
        %433 = vmatprep.subr.mxu0 0.0
        %434 = vmatpush1.msra.mxu0 0.0
        %435 = vmatprep.subr.mxu0 0.0
        %436 = vmatpush1.msra.mxu0 0.0
        %437 = vmatprep.subr.mxu0 0.0
        %438 = vmatpush1.msra.mxu0 0.0
        %439 = vmatprep.subr.mxu0 0.0
        %440 = vmatpush1.msra.mxu0 0.0
        %441 = vmatprep.subr.mxu0 0.0
        %442 = vmatpush1.msra.mxu0 0.0
        %443 = vmatprep.mubr.f32.mxu0 0.0
        %444 = vmatmul.mubr.f32.gmra.mrb[0].mxu0 %v368
        %v445 = vpop.f32.mrb[0].mxu0
        %v446 = vadd.f32 %v349, %v445
        %v447 = vpop.f32.mrb[0].mxu0
        %v448 = vadd.f32 %v349, %v447
        %449 = vmatprep.mubr.f32.mxu0 0.0
        %450 = vmatmul.mubr.f32.gmra.mrb[0].mxu0 %v371
        %v451 = vpop.f32.mrb[0].mxu0
        %v452 = vadd.f32 %v354, %v451
        %v453 = vpop.f32.mrb[0].mxu0
        %v454 = vadd.f32 %v354, %v453
        %455 = vmatprep.mubr.f32.mxu0 0.0
        %456 = vmatmul.mubr.f32.gmra.mrb[0].mxu0 %v374
        %v457 = vpop.f32.mrb[0].mxu0
        %v458 = vadd.f32 %v359, %v457
        %v459 = vpop.f32.mrb[0].mxu0
        %v460 = vadd.f32 %v359, %v459
        %461 = vmatprep.mubr.f32.mxu0 0.0
        %462 = vmatmul.mubr.f32.gmra.mrb[0].mxu0 %v377
        %v463 = vpop.f32.mrb[0].mxu0
        %v464 = vadd.f32 %v364, %v463
        %v465 = vpop.f32.mrb[0].mxu0
        %v466 = vadd.f32 %v364, %v465
        %467 = vdwg.mxu0
        %468 = vmatprep.subr.mxu0 %v325
        %469 = vmatpush1.msra.mxu0 %v324
        %470 = vmatprep.subr.mxu0 %v329
        %471 = vmatpush1.msra.mxu0 %v328
        %472 = vmatprep.subr.mxu0 %v333
        %473 = vmatpush1.msra.mxu0 %v332
        %474 = vmatprep.subr.mxu0 %v337
        %475 = vmatpush1.msra.mxu0 %v336
        %476 = vmatprep.subr.mxu0 0.0
        %477 = vmatpush1.msra.mxu0 0.0
        %478 = vmatprep.subr.mxu0 0.0
        %479 = vmatpush1.msra.mxu0 0.0
        %480 = vmatprep.subr.mxu0 0.0
        %481 = vmatpush1.msra.mxu0 0.0
        %482 = vmatprep.subr.mxu0 0.0
        %483 = vmatpush1.msra.mxu0 0.0
        %484 = vmatprep.subr.mxu0 0.0
        %485 = vmatpush1.msra.mxu0 0.0
        %486 = vmatprep.subr.mxu0 0.0
        %487 = vmatpush1.msra.mxu0 0.0
        %488 = vmatprep.subr.mxu0 0.0
        %489 = vmatpush1.msra.mxu0 0.0
        %490 = vmatprep.subr.mxu0 0.0
        %491 = vmatpush1.msra.mxu0 0.0
        %492 = vmatprep.subr.mxu0 0.0
        %493 = vmatpush1.msra.mxu0 0.0
        %494 = vmatprep.subr.mxu0 0.0
        %495 = vmatpush1.msra.mxu0 0.0
        %496 = vmatprep.subr.mxu0 0.0
        %497 = vmatpush1.msra.mxu0 0.0
        %498 = vmatprep.subr.mxu0 0.0
        %499 = vmatpush1.msra.mxu0 0.0
        %500 = vmatprep.subr.mxu0 0.0
        %501 = vmatpush1.msra.mxu0 0.0
        %502 = vmatprep.subr.mxu0 0.0
        %503 = vmatpush1.msra.mxu0 0.0
        %504 = vmatprep.subr.mxu0 0.0
        %505 = vmatpush1.msra.mxu0 0.0
        %506 = vmatprep.subr.mxu0 0.0
        %507 = vmatpush1.msra.mxu0 0.0
        %508 = vmatprep.subr.mxu0 0.0
        %509 = vmatpush1.msra.mxu0 0.0
        %510 = vmatprep.subr.mxu0 0.0
        %511 = vmatpush1.msra.mxu0 0.0
        %512 = vmatprep.subr.mxu0 0.0
        %513 = vmatpush1.msra.mxu0 0.0
        %514 = vmatprep.subr.mxu0 0.0
        %515 = vmatpush1.msra.mxu0 0.0
        %516 = vmatprep.subr.mxu0 0.0
        %517 = vmatpush1.msra.mxu0 0.0
        %518 = vmatprep.subr.mxu0 0.0
        %519 = vmatpush1.msra.mxu0 0.0
        %520 = vmatprep.subr.mxu0 0.0
        %521 = vmatpush1.msra.mxu0 0.0
        %522 = vmatprep.subr.mxu0 0.0
        %523 = vmatpush1.msra.mxu0 0.0
        %524 = vmatprep.subr.mxu0 0.0
        %525 = vmatpush1.msra.mxu0 0.0
        %526 = vmatprep.subr.mxu0 0.0
        %527 = vmatpush1.msra.mxu0 0.0
        %528 = vmatprep.subr.mxu0 0.0
        %529 = vmatpush1.msra.mxu0 0.0
        %530 = vmatprep.subr.mxu0 0.0
        %531 = vmatpush1.msra.mxu0 0.0
        %532 = vmatprep.mubr.f32.mxu0 0.0
        %533 = vmatmul.mubr.f32.gmra.mrb[0].mxu0 %v368
        %v534 = vpop.f32.mrb[0].mxu0
        %v535 = vadd.f32 %v349, %v534
        %v536 = vpop.f32.mrb[0].mxu0
        %v537 = vadd.f32 %v349, %v536
        %538 = vmatprep.mubr.f32.mxu0 0.0
        %539 = vmatmul.mubr.f32.gmra.mrb[0].mxu0 %v371
        %v540 = vpop.f32.mrb[0].mxu0
        %v541 = vadd.f32 %v354, %v540
        %v542 = vpop.f32.mrb[0].mxu0
        %v543 = vadd.f32 %v354, %v542
        %544 = vmatprep.mubr.f32.mxu0 0.0
        %545 = vmatmul.mubr.f32.gmra.mrb[0].mxu0 %v374
        %v546 = vpop.f32.mrb[0].mxu0
        %v547 = vadd.f32 %v359, %v546
        %v548 = vpop.f32.mrb[0].mxu0
        %v549 = vadd.f32 %v359, %v548
        %550 = vmatprep.mubr.f32.mxu0 0.0
        %551 = vmatmul.mubr.f32.gmra.mrb[0].mxu0 %v377
        %v552 = vpop.f32.mrb[0].mxu0
        %v553 = vadd.f32 %v364, %v552
        %v554 = vpop.f32.mrb[0].mxu0
        %v555 = vadd.f32 %v364, %v554
        %556 = vdwg.mxu0
        %v557 = vmax.f32 %v446, 0.0
        %v558 = vmax.f32 %v448, 0.0
        %v559 = vmax.f32 %v535, 0.0
        %v560 = vmax.f32 %v537, 0.0
        %v561 = vmax.f32 %v452, 0.0
        %v562 = vmax.f32 %v454, 0.0
        %v563 = vmax.f32 %v541, 0.0
        %v564 = vmax.f32 %v543, 0.0
        %v565 = vmax.f32 %v458, 0.0
        %v566 = vmax.f32 %v460, 0.0
        %v567 = vmax.f32 %v547, 0.0
        %v568 = vmax.f32 %v549, 0.0
        %v569 = vmax.f32 %v464, 0.0
        %v570 = vmax.f32 %v466, 0.0
        %v571 = vmax.f32 %v553, 0.0
        %v572 = vmax.f32 %v555, 0.0
        %v573 = vld [vmem:[%s2 + $0x20] sm:$0xff]
        %v574 = vld [vmem:[%s2 + $0x28] sm:$0xff]
        %v575 = vld [vmem:[%s2 + $0x30] sm:$0xff]
        %v576 = vld [vmem:[%s2 + $0x38] sm:$0xff]
        %578 = vset.pattern.permute.xlu0 0
        %579 = vperm.xlu0 %578, %v266
        %v580 = vpop.permute.xlu0 %579
        %583 = vset.pattern.permute.xlu0 0
        %584 = vperm.xlu0 %583, %v267
        %v585 = vpop.permute.xlu0 %584
        %588 = vset.pattern.permute.xlu0 0
        %589 = vperm.xlu0 %588, %v268
        %v590 = vpop.permute.xlu0 %589
        %593 = vset.pattern.permute.xlu0 0
        %594 = vperm.xlu0 %593, %v269
        %v595 = vpop.permute.xlu0 %594
        %v598 = vsel %vm366, %v573, 0
        %v601 = vsel %vm366, %v574, 0
        %v604 = vsel %vm366, %v575, 0
        %v607 = vsel %vm366, %v576, 0
        %609 = vmatprep.subr.mxu0 %v558
        %610 = vmatpush1.msra.mxu0 %v557
        %611 = vmatprep.subr.mxu0 %v562
        %612 = vmatpush1.msra.mxu0 %v561
        %613 = vmatprep.subr.mxu0 %v566
        %614 = vmatpush1.msra.mxu0 %v565
        %615 = vmatprep.subr.mxu0 %v570
        %616 = vmatpush1.msra.mxu0 %v569
        %617 = vmatprep.subr.mxu0 0.0
        %618 = vmatpush1.msra.mxu0 0.0
        %619 = vmatprep.subr.mxu0 0.0
        %620 = vmatpush1.msra.mxu0 0.0
        %621 = vmatprep.subr.mxu0 0.0
        %622 = vmatpush1.msra.mxu0 0.0
        %623 = vmatprep.subr.mxu0 0.0
        %624 = vmatpush1.msra.mxu0 0.0
        %625 = vmatprep.subr.mxu0 0.0
        %626 = vmatpush1.msra.mxu0 0.0
        %627 = vmatprep.subr.mxu0 0.0
        %628 = vmatpush1.msra.mxu0 0.0
        %629 = vmatprep.subr.mxu0 0.0
        %630 = vmatpush1.msra.mxu0 0.0
        %631 = vmatprep.subr.mxu0 0.0
        %632 = vmatpush1.msra.mxu0 0.0
        %633 = vmatprep.subr.mxu0 0.0
        %634 = vmatpush1.msra.mxu0 0.0
        %635 = vmatprep.subr.mxu0 0.0
        %636 = vmatpush1.msra.mxu0 0.0
        %637 = vmatprep.subr.mxu0 0.0
        %638 = vmatpush1.msra.mxu0 0.0
        %639 = vmatprep.subr.mxu0 0.0
        %640 = vmatpush1.msra.mxu0 0.0
        %641 = vmatprep.subr.mxu0 0.0
        %642 = vmatpush1.msra.mxu0 0.0
        %643 = vmatprep.subr.mxu0 0.0
        %644 = vmatpush1.msra.mxu0 0.0
        %645 = vmatprep.subr.mxu0 0.0
        %646 = vmatpush1.msra.mxu0 0.0
        %647 = vmatprep.subr.mxu0 0.0
        %648 = vmatpush1.msra.mxu0 0.0
        %649 = vmatprep.subr.mxu0 0.0
        %650 = vmatpush1.msra.mxu0 0.0
        %651 = vmatprep.subr.mxu0 0.0
        %652 = vmatpush1.msra.mxu0 0.0
        %653 = vmatprep.subr.mxu0 0.0
        %654 = vmatpush1.msra.mxu0 0.0
        %655 = vmatprep.subr.mxu0 0.0
        %656 = vmatpush1.msra.mxu0 0.0
        %657 = vmatprep.subr.mxu0 0.0
        %658 = vmatpush1.msra.mxu0 0.0
        %659 = vmatprep.subr.mxu0 0.0
        %660 = vmatpush1.msra.mxu0 0.0
        %661 = vmatprep.subr.mxu0 0.0
        %662 = vmatpush1.msra.mxu0 0.0
        %663 = vmatprep.subr.mxu0 0.0
        %664 = vmatpush1.msra.mxu0 0.0
        %665 = vmatprep.subr.mxu0 0.0
        %666 = vmatpush1.msra.mxu0 0.0
        %667 = vmatprep.subr.mxu0 0.0
        %668 = vmatpush1.msra.mxu0 0.0
        %669 = vmatprep.subr.mxu0 0.0
        %670 = vmatpush1.msra.mxu0 0.0
        %671 = vmatprep.subr.mxu0 0.0
        %672 = vmatpush1.msra.mxu0 0.0
        %673 = vmatprep.mubr.f32.mxu0 0.0
        %674 = vmatmul.mubr.f32.gmra.mrb[0].mxu0 %v598
        %v675 = vpop.f32.mrb[0].mxu0
        %v676 = vadd.f32 %v580, %v675
        %v677 = vpop.f32.mrb[0].mxu0
        %v678 = vadd.f32 %v580, %v677
        %679 = vmatprep.mubr.f32.mxu0 0.0
        %680 = vmatmul.mubr.f32.gmra.mrb[0].mxu0 %v601
        %v681 = vpop.f32.mrb[0].mxu0
        %v682 = vadd.f32 %v585, %v681
        %v683 = vpop.f32.mrb[0].mxu0
        %v684 = vadd.f32 %v585, %v683
        %685 = vmatprep.mubr.f32.mxu0 0.0
        %686 = vmatmul.mubr.f32.gmra.mrb[0].mxu0 %v604
        %v687 = vpop.f32.mrb[0].mxu0
        %v688 = vadd.f32 %v590, %v687
        %v689 = vpop.f32.mrb[0].mxu0
        %v690 = vadd.f32 %v590, %v689
        %691 = vmatprep.mubr.f32.mxu0 0.0
        %692 = vmatmul.mubr.f32.gmra.mrb[0].mxu0 %v607
        %v693 = vpop.f32.mrb[0].mxu0
        %v694 = vadd.f32 %v595, %v693
        %v695 = vpop.f32.mrb[0].mxu0
        %v696 = vadd.f32 %v595, %v695
        %697 = vdwg.mxu0
        %698 = vmatprep.subr.mxu0 %v560
        %699 = vmatpush1.msra.mxu0 %v559
        %700 = vmatprep.subr.mxu0 %v564
        %701 = vmatpush1.msra.mxu0 %v563
        %702 = vmatprep.subr.mxu0 %v568
        %703 = vmatpush1.msra.mxu0 %v567
        %704 = vmatprep.subr.mxu0 %v572
        %705 = vmatpush1.msra.mxu0 %v571
        %706 = vmatprep.subr.mxu0 0.0
        %707 = vmatpush1.msra.mxu0 0.0
        %708 = vmatprep.subr.mxu0 0.0
        %709 = vmatpush1.msra.mxu0 0.0
        %710 = vmatprep.subr.mxu0 0.0
        %711 = vmatpush1.msra.mxu0 0.0
        %712 = vmatprep.subr.mxu0 0.0
        %713 = vmatpush1.msra.mxu0 0.0
        %714 = vmatprep.subr.mxu0 0.0
        %715 = vmatpush1.msra.mxu0 0.0
        %716 = vmatprep.subr.mxu0 0.0
        %717 = vmatpush1.msra.mxu0 0.0
        %718 = vmatprep.subr.mxu0 0.0
        %719 = vmatpush1.msra.mxu0 0.0
        %720 = vmatprep.subr.mxu0 0.0
        %721 = vmatpush1.msra.mxu0 0.0
        %722 = vmatprep.subr.mxu0 0.0
        %723 = vmatpush1.msra.mxu0 0.0
        %724 = vmatprep.subr.mxu0 0.0
        %725 = vmatpush1.msra.mxu0 0.0
        %726 = vmatprep.subr.mxu0 0.0
        %727 = vmatpush1.msra.mxu0 0.0
        %728 = vmatprep.subr.mxu0 0.0
        %729 = vmatpush1.msra.mxu0 0.0
        %730 = vmatprep.subr.mxu0 0.0
        %731 = vmatpush1.msra.mxu0 0.0
        %732 = vmatprep.subr.mxu0 0.0
        %733 = vmatpush1.msra.mxu0 0.0
        %734 = vmatprep.subr.mxu0 0.0
        %735 = vmatpush1.msra.mxu0 0.0
        %736 = vmatprep.subr.mxu0 0.0
        %737 = vmatpush1.msra.mxu0 0.0
        %738 = vmatprep.subr.mxu0 0.0
        %739 = vmatpush1.msra.mxu0 0.0
        %740 = vmatprep.subr.mxu0 0.0
        %741 = vmatpush1.msra.mxu0 0.0
        %742 = vmatprep.subr.mxu0 0.0
        %743 = vmatpush1.msra.mxu0 0.0
        %744 = vmatprep.subr.mxu0 0.0
        %745 = vmatpush1.msra.mxu0 0.0
        %746 = vmatprep.subr.mxu0 0.0
        %747 = vmatpush1.msra.mxu0 0.0
        %748 = vmatprep.subr.mxu0 0.0
        %749 = vmatpush1.msra.mxu0 0.0
        %750 = vmatprep.subr.mxu0 0.0
        %751 = vmatpush1.msra.mxu0 0.0
        %752 = vmatprep.subr.mxu0 0.0
        %753 = vmatpush1.msra.mxu0 0.0
        %754 = vmatprep.subr.mxu0 0.0
        %755 = vmatpush1.msra.mxu0 0.0
        %756 = vmatprep.subr.mxu0 0.0
        %757 = vmatpush1.msra.mxu0 0.0
        %758 = vmatprep.subr.mxu0 0.0
        %759 = vmatpush1.msra.mxu0 0.0
        %760 = vmatprep.subr.mxu0 0.0
        %761 = vmatpush1.msra.mxu0 0.0
        %762 = vmatprep.mubr.f32.mxu0 0.0
        %763 = vmatmul.mubr.f32.gmra.mrb[0].mxu0 %v598
        %v764 = vpop.f32.mrb[0].mxu0
        %v765 = vadd.f32 %v580, %v764
        %v766 = vpop.f32.mrb[0].mxu0
        %v767 = vadd.f32 %v580, %v766
        %768 = vmatprep.mubr.f32.mxu0 0.0
        %769 = vmatmul.mubr.f32.gmra.mrb[0].mxu0 %v601
        %v770 = vpop.f32.mrb[0].mxu0
        %v771 = vadd.f32 %v585, %v770
        %v772 = vpop.f32.mrb[0].mxu0
        %v773 = vadd.f32 %v585, %v772
        %774 = vmatprep.mubr.f32.mxu0 0.0
        %775 = vmatmul.mubr.f32.gmra.mrb[0].mxu0 %v604
        %v776 = vpop.f32.mrb[0].mxu0
        %v777 = vadd.f32 %v590, %v776
        %v778 = vpop.f32.mrb[0].mxu0
        %v779 = vadd.f32 %v590, %v778
        %780 = vmatprep.mubr.f32.mxu0 0.0
        %781 = vmatmul.mubr.f32.gmra.mrb[0].mxu0 %v607
        %v782 = vpop.f32.mrb[0].mxu0
        %v783 = vadd.f32 %v595, %v782
        %v784 = vpop.f32.mrb[0].mxu0
        %v785 = vadd.f32 %v595, %v784
        %786 = vdwg.mxu0
        %v787 = vmax.f32 %v676, 0.0
        %v788 = vmax.f32 %v678, 0.0
        %v789 = vmax.f32 %v765, 0.0
        %v790 = vmax.f32 %v767, 0.0
        %v791 = vmax.f32 %v682, 0.0
        %v792 = vmax.f32 %v684, 0.0
        %v793 = vmax.f32 %v771, 0.0
        %v794 = vmax.f32 %v773, 0.0
        %v795 = vmax.f32 %v688, 0.0
        %v796 = vmax.f32 %v690, 0.0
        %v797 = vmax.f32 %v777, 0.0
        %v798 = vmax.f32 %v779, 0.0
        %v799 = vmax.f32 %v694, 0.0
        %v800 = vmax.f32 %v696, 0.0
        %v801 = vmax.f32 %v783, 0.0
        %v802 = vmax.f32 %v785, 0.0
        %v803 = vld [vmem:[%s2 + $0x40] sm:$0xff]
        %v804 = vld [vmem:[%s2 + $0x48] sm:$0xff]
        %v805 = vld [vmem:[%s2 + $0x50] sm:$0xff]
        %v806 = vld [vmem:[%s2 + $0x58] sm:$0xff]
        %v807 = vld [vmem:[%s3 + $0x20] sm:$0xff]
        %v808 = vld [vmem:[%s3 + $0x28] sm:$0xff]
        %v809 = vld [vmem:[%s3 + $0x30] sm:$0xff]
        %v810 = vld [vmem:[%s3 + $0x38] sm:$0xff]
        %812 = vset.pattern.permute.xlu0 0
        %813 = vperm.xlu0 %812, %v807
        %v814 = vpop.permute.xlu0 %813
        %817 = vset.pattern.permute.xlu0 0
        %818 = vperm.xlu0 %817, %v808
        %v819 = vpop.permute.xlu0 %818
        %822 = vset.pattern.permute.xlu0 0
        %823 = vperm.xlu0 %822, %v809
        %v824 = vpop.permute.xlu0 %823
        %827 = vset.pattern.permute.xlu0 0
        %828 = vperm.xlu0 %827, %v810
        %v829 = vpop.permute.xlu0 %828
        %v832 = vsel %vm366, %v803, 0
        %v835 = vsel %vm366, %v804, 0
        %v838 = vsel %vm366, %v805, 0
        %v841 = vsel %vm366, %v806, 0
        %843 = vmatprep.subr.mxu0 %v788
        %844 = vmatpush1.msra.mxu0 %v787
        %845 = vmatprep.subr.mxu0 %v792
        %846 = vmatpush1.msra.mxu0 %v791
        %847 = vmatprep.subr.mxu0 %v796
        %848 = vmatpush1.msra.mxu0 %v795
        %849 = vmatprep.subr.mxu0 %v800
        %850 = vmatpush1.msra.mxu0 %v799
        %851 = vmatprep.subr.mxu0 0.0
        %852 = vmatpush1.msra.mxu0 0.0
        %853 = vmatprep.subr.mxu0 0.0
        %854 = vmatpush1.msra.mxu0 0.0
        %855 = vmatprep.subr.mxu0 0.0
        %856 = vmatpush1.msra.mxu0 0.0
        %857 = vmatprep.subr.mxu0 0.0
        %858 = vmatpush1.msra.mxu0 0.0
        %859 = vmatprep.subr.mxu0 0.0
        %860 = vmatpush1.msra.mxu0 0.0
        %861 = vmatprep.subr.mxu0 0.0
        %862 = vmatpush1.msra.mxu0 0.0
        %863 = vmatprep.subr.mxu0 0.0
        %864 = vmatpush1.msra.mxu0 0.0
        %865 = vmatprep.subr.mxu0 0.0
        %866 = vmatpush1.msra.mxu0 0.0
        %867 = vmatprep.subr.mxu0 0.0
        %868 = vmatpush1.msra.mxu0 0.0
        %869 = vmatprep.subr.mxu0 0.0
        %870 = vmatpush1.msra.mxu0 0.0
        %871 = vmatprep.subr.mxu0 0.0
        %872 = vmatpush1.msra.mxu0 0.0
        %873 = vmatprep.subr.mxu0 0.0
        %874 = vmatpush1.msra.mxu0 0.0
        %875 = vmatprep.subr.mxu0 0.0
        %876 = vmatpush1.msra.mxu0 0.0
        %877 = vmatprep.subr.mxu0 0.0
        %878 = vmatpush1.msra.mxu0 0.0
        %879 = vmatprep.subr.mxu0 0.0
        %880 = vmatpush1.msra.mxu0 0.0
        %881 = vmatprep.subr.mxu0 0.0
        %882 = vmatpush1.msra.mxu0 0.0
        %883 = vmatprep.subr.mxu0 0.0
        %884 = vmatpush1.msra.mxu0 0.0
        %885 = vmatprep.subr.mxu0 0.0
        %886 = vmatpush1.msra.mxu0 0.0
        %887 = vmatprep.subr.mxu0 0.0
        %888 = vmatpush1.msra.mxu0 0.0
        %889 = vmatprep.subr.mxu0 0.0
        %890 = vmatpush1.msra.mxu0 0.0
        %891 = vmatprep.subr.mxu0 0.0
        %892 = vmatpush1.msra.mxu0 0.0
        %893 = vmatprep.subr.mxu0 0.0
        %894 = vmatpush1.msra.mxu0 0.0
        %895 = vmatprep.subr.mxu0 0.0
        %896 = vmatpush1.msra.mxu0 0.0
        %897 = vmatprep.subr.mxu0 0.0
        %898 = vmatpush1.msra.mxu0 0.0
        %899 = vmatprep.subr.mxu0 0.0
        %900 = vmatpush1.msra.mxu0 0.0
        %901 = vmatprep.subr.mxu0 0.0
        %902 = vmatpush1.msra.mxu0 0.0
        %903 = vmatprep.subr.mxu0 0.0
        %904 = vmatpush1.msra.mxu0 0.0
        %905 = vmatprep.subr.mxu0 0.0
        %906 = vmatpush1.msra.mxu0 0.0
        %907 = vmatprep.mubr.f32.mxu0 0.0
        %908 = vmatmul.mubr.f32.gmra.mrb[0].mxu0 %v832
        %v909 = vpop.f32.mrb[0].mxu0
        %v910 = vadd.f32 %v814, %v909
        %v911 = vpop.f32.mrb[0].mxu0
        %v912 = vadd.f32 %v814, %v911
        %913 = vmatprep.mubr.f32.mxu0 0.0
        %914 = vmatmul.mubr.f32.gmra.mrb[0].mxu0 %v835
        %v915 = vpop.f32.mrb[0].mxu0
        %v916 = vadd.f32 %v819, %v915
        %v917 = vpop.f32.mrb[0].mxu0
        %v918 = vadd.f32 %v819, %v917
        %919 = vmatprep.mubr.f32.mxu0 0.0
        %920 = vmatmul.mubr.f32.gmra.mrb[0].mxu0 %v838
        %v921 = vpop.f32.mrb[0].mxu0
        %v922 = vadd.f32 %v824, %v921
        %v923 = vpop.f32.mrb[0].mxu0
        %v924 = vadd.f32 %v824, %v923
        %925 = vmatprep.mubr.f32.mxu0 0.0
        %926 = vmatmul.mubr.f32.gmra.mrb[0].mxu0 %v841
        %v927 = vpop.f32.mrb[0].mxu0
        %v928 = vadd.f32 %v829, %v927
        %v929 = vpop.f32.mrb[0].mxu0
        %v930 = vadd.f32 %v829, %v929
        %931 = vdwg.mxu0
        %932 = vmatprep.subr.mxu0 %v790
        %933 = vmatpush1.msra.mxu0 %v789
        %934 = vmatprep.subr.mxu0 %v794
        %935 = vmatpush1.msra.mxu0 %v793
        %936 = vmatprep.subr.mxu0 %v798
        %937 = vmatpush1.msra.mxu0 %v797
        %938 = vmatprep.subr.mxu0 %v802
        %939 = vmatpush1.msra.mxu0 %v801
        %940 = vmatprep.subr.mxu0 0.0
        %941 = vmatpush1.msra.mxu0 0.0
        %942 = vmatprep.subr.mxu0 0.0
        %943 = vmatpush1.msra.mxu0 0.0
        %944 = vmatprep.subr.mxu0 0.0
        %945 = vmatpush1.msra.mxu0 0.0
        %946 = vmatprep.subr.mxu0 0.0
        %947 = vmatpush1.msra.mxu0 0.0
        %948 = vmatprep.subr.mxu0 0.0
        %949 = vmatpush1.msra.mxu0 0.0
        %950 = vmatprep.subr.mxu0 0.0
        %951 = vmatpush1.msra.mxu0 0.0
        %952 = vmatprep.subr.mxu0 0.0
        %953 = vmatpush1.msra.mxu0 0.0
        %954 = vmatprep.subr.mxu0 0.0
        %955 = vmatpush1.msra.mxu0 0.0
        %956 = vmatprep.subr.mxu0 0.0
        %957 = vmatpush1.msra.mxu0 0.0
        %958 = vmatprep.subr.mxu0 0.0
        %959 = vmatpush1.msra.mxu0 0.0
        %960 = vmatprep.subr.mxu0 0.0
        %961 = vmatpush1.msra.mxu0 0.0
        %962 = vmatprep.subr.mxu0 0.0
        %963 = vmatpush1.msra.mxu0 0.0
        %964 = vmatprep.subr.mxu0 0.0
        %965 = vmatpush1.msra.mxu0 0.0
        %966 = vmatprep.subr.mxu0 0.0
        %967 = vmatpush1.msra.mxu0 0.0
        %968 = vmatprep.subr.mxu0 0.0
        %969 = vmatpush1.msra.mxu0 0.0
        %970 = vmatprep.subr.mxu0 0.0
        %971 = vmatpush1.msra.mxu0 0.0
        %972 = vmatprep.subr.mxu0 0.0
        %973 = vmatpush1.msra.mxu0 0.0
        %974 = vmatprep.subr.mxu0 0.0
        %975 = vmatpush1.msra.mxu0 0.0
        %976 = vmatprep.subr.mxu0 0.0
        %977 = vmatpush1.msra.mxu0 0.0
        %978 = vmatprep.subr.mxu0 0.0
        %979 = vmatpush1.msra.mxu0 0.0
        %980 = vmatprep.subr.mxu0 0.0
        %981 = vmatpush1.msra.mxu0 0.0
        %982 = vmatprep.subr.mxu0 0.0
        %983 = vmatpush1.msra.mxu0 0.0
        %984 = vmatprep.subr.mxu0 0.0
        %985 = vmatpush1.msra.mxu0 0.0
        %986 = vmatprep.subr.mxu0 0.0
        %987 = vmatpush1.msra.mxu0 0.0
        %988 = vmatprep.subr.mxu0 0.0
        %989 = vmatpush1.msra.mxu0 0.0
        %990 = vmatprep.subr.mxu0 0.0
        %991 = vmatpush1.msra.mxu0 0.0
        %992 = vmatprep.subr.mxu0 0.0
        %993 = vmatpush1.msra.mxu0 0.0
        %994 = vmatprep.subr.mxu0 0.0
        %995 = vmatpush1.msra.mxu0 0.0
        %996 = vmatprep.mubr.f32.mxu0 0.0
        %997 = vmatmul.mubr.f32.gmra.mrb[0].mxu0 %v832
        %v998 = vpop.f32.mrb[0].mxu0
        %v999 = vadd.f32 %v814, %v998
        %v1000 = vpop.f32.mrb[0].mxu0
        %v1001 = vadd.f32 %v814, %v1000
        %1002 = vmatprep.mubr.f32.mxu0 0.0
        %1003 = vmatmul.mubr.f32.gmra.mrb[0].mxu0 %v835
        %v1004 = vpop.f32.mrb[0].mxu0
        %v1005 = vadd.f32 %v819, %v1004
        %v1006 = vpop.f32.mrb[0].mxu0
        %v1007 = vadd.f32 %v819, %v1006
        %1008 = vmatprep.mubr.f32.mxu0 0.0
        %1009 = vmatmul.mubr.f32.gmra.mrb[0].mxu0 %v838
        %v1010 = vpop.f32.mrb[0].mxu0
        %v1011 = vadd.f32 %v824, %v1010
        %v1012 = vpop.f32.mrb[0].mxu0
        %v1013 = vadd.f32 %v824, %v1012
        %1014 = vmatprep.mubr.f32.mxu0 0.0
        %1015 = vmatmul.mubr.f32.gmra.mrb[0].mxu0 %v841
        %v1016 = vpop.f32.mrb[0].mxu0
        %v1017 = vadd.f32 %v829, %v1016
        %v1018 = vpop.f32.mrb[0].mxu0
        %v1019 = vadd.f32 %v829, %v1018
        %1020 = vdwg.mxu0
        %v1021 = vmax.f32 %v910, 0.0
        %v1022 = vmax.f32 %v912, 0.0
        %v1023 = vmax.f32 %v999, 0.0
        %v1024 = vmax.f32 %v1001, 0.0
        %v1025 = vmax.f32 %v916, 0.0
        %v1026 = vmax.f32 %v918, 0.0
        %v1027 = vmax.f32 %v1005, 0.0
        %v1028 = vmax.f32 %v1007, 0.0
        %v1029 = vmax.f32 %v922, 0.0
        %v1030 = vmax.f32 %v924, 0.0
        %v1031 = vmax.f32 %v1011, 0.0
        %v1032 = vmax.f32 %v1013, 0.0
        %v1033 = vmax.f32 %v928, 0.0
        %v1034 = vmax.f32 %v930, 0.0
        %v1035 = vmax.f32 %v1017, 0.0
        %v1036 = vmax.f32 %v1019, 0.0
        %v1037 = vld [vmem:[%s2 + $0x60] sm:$0xff]
        %v1038 = vld [vmem:[%s3 + $0x40] sm:$0xff]
        %1040 = vset.pattern.permute.xlu0 0
        %1041 = vperm.xlu0 %1040, %v1038
        %v1042 = vpop.permute.xlu0 %1041
        %v1045 = vsel %vm366, %v1037, 0
        %1047 = vmatprep.subr.mxu0 %v1022
        %1048 = vmatpush1.msra.mxu0 %v1021
        %1049 = vmatprep.subr.mxu0 %v1026
        %1050 = vmatpush1.msra.mxu0 %v1025
        %1051 = vmatprep.subr.mxu0 %v1030
        %1052 = vmatpush1.msra.mxu0 %v1029
        %1053 = vmatprep.subr.mxu0 %v1034
        %1054 = vmatpush1.msra.mxu0 %v1033
        %1055 = vmatprep.subr.mxu0 0.0
        %1056 = vmatpush1.msra.mxu0 0.0
        %1057 = vmatprep.subr.mxu0 0.0
        %1058 = vmatpush1.msra.mxu0 0.0
        %1059 = vmatprep.subr.mxu0 0.0
        %1060 = vmatpush1.msra.mxu0 0.0
        %1061 = vmatprep.subr.mxu0 0.0
        %1062 = vmatpush1.msra.mxu0 0.0
        %1063 = vmatprep.subr.mxu0 0.0
        %1064 = vmatpush1.msra.mxu0 0.0
        %1065 = vmatprep.subr.mxu0 0.0
        %1066 = vmatpush1.msra.mxu0 0.0
        %1067 = vmatprep.subr.mxu0 0.0
        %1068 = vmatpush1.msra.mxu0 0.0
        %1069 = vmatprep.subr.mxu0 0.0
        %1070 = vmatpush1.msra.mxu0 0.0
        %1071 = vmatprep.subr.mxu0 0.0
        %1072 = vmatpush1.msra.mxu0 0.0
        %1073 = vmatprep.subr.mxu0 0.0
        %1074 = vmatpush1.msra.mxu0 0.0
        %1075 = vmatprep.subr.mxu0 0.0
        %1076 = vmatpush1.msra.mxu0 0.0
        %1077 = vmatprep.subr.mxu0 0.0
        %1078 = vmatpush1.msra.mxu0 0.0
        %1079 = vmatprep.subr.mxu0 0.0
        %1080 = vmatpush1.msra.mxu0 0.0
        %1081 = vmatprep.subr.mxu0 0.0
        %1082 = vmatpush1.msra.mxu0 0.0
        %1083 = vmatprep.subr.mxu0 0.0
        %1084 = vmatpush1.msra.mxu0 0.0
        %1085 = vmatprep.subr.mxu0 0.0
        %1086 = vmatpush1.msra.mxu0 0.0
        %1087 = vmatprep.subr.mxu0 0.0
        %1088 = vmatpush1.msra.mxu0 0.0
        %1089 = vmatprep.subr.mxu0 0.0
        %1090 = vmatpush1.msra.mxu0 0.0
        %1091 = vmatprep.subr.mxu0 0.0
        %1092 = vmatpush1.msra.mxu0 0.0
        %1093 = vmatprep.subr.mxu0 0.0
        %1094 = vmatpush1.msra.mxu0 0.0
        %1095 = vmatprep.subr.mxu0 0.0
        %1096 = vmatpush1.msra.mxu0 0.0
        %1097 = vmatprep.subr.mxu0 0.0
        %1098 = vmatpush1.msra.mxu0 0.0
        %1099 = vmatprep.subr.mxu0 0.0
        %1100 = vmatpush1.msra.mxu0 0.0
        %1101 = vmatprep.subr.mxu0 0.0
        %1102 = vmatpush1.msra.mxu0 0.0
        %1103 = vmatprep.subr.mxu0 0.0
        %1104 = vmatpush1.msra.mxu0 0.0
        %1105 = vmatprep.subr.mxu0 0.0
        %1106 = vmatpush1.msra.mxu0 0.0
        %1107 = vmatprep.subr.mxu0 0.0
        %1108 = vmatpush1.msra.mxu0 0.0
        %1109 = vmatprep.subr.mxu0 0.0
        %1110 = vmatpush1.msra.mxu0 0.0
        %1111 = vmatprep.mubr.f32.mxu0 0.0
        %1112 = vmatmul.mubr.f32.gmra.mrb[0].mxu0 %v1045
        %v1113 = vpop.f32.mrb[0].mxu0
        %v1114 = vadd.f32 %v1042, %v1113
        %v1115 = vpop.f32.mrb[0].mxu0
        %v1116 = vadd.f32 %v1042, %v1115
        %1117 = vdwg.mxu0
        %1118 = vmatprep.subr.mxu0 %v1024
        %1119 = vmatpush1.msra.mxu0 %v1023
        %1120 = vmatprep.subr.mxu0 %v1028
        %1121 = vmatpush1.msra.mxu0 %v1027
        %1122 = vmatprep.subr.mxu0 %v1032
        %1123 = vmatpush1.msra.mxu0 %v1031
        %1124 = vmatprep.subr.mxu0 %v1036
        %1125 = vmatpush1.msra.mxu0 %v1035
        %1126 = vmatprep.subr.mxu0 0.0
        %1127 = vmatpush1.msra.mxu0 0.0
        %1128 = vmatprep.subr.mxu0 0.0
        %1129 = vmatpush1.msra.mxu0 0.0
        %1130 = vmatprep.subr.mxu0 0.0
        %1131 = vmatpush1.msra.mxu0 0.0
        %1132 = vmatprep.subr.mxu0 0.0
        %1133 = vmatpush1.msra.mxu0 0.0
        %1134 = vmatprep.subr.mxu0 0.0
        %1135 = vmatpush1.msra.mxu0 0.0
        %1136 = vmatprep.subr.mxu0 0.0
        %1137 = vmatpush1.msra.mxu0 0.0
        %1138 = vmatprep.subr.mxu0 0.0
        %1139 = vmatpush1.msra.mxu0 0.0
        %1140 = vmatprep.subr.mxu0 0.0
        %1141 = vmatpush1.msra.mxu0 0.0
        %1142 = vmatprep.subr.mxu0 0.0
        %1143 = vmatpush1.msra.mxu0 0.0
        %1144 = vmatprep.subr.mxu0 0.0
        %1145 = vmatpush1.msra.mxu0 0.0
        %1146 = vmatprep.subr.mxu0 0.0
        %1147 = vmatpush1.msra.mxu0 0.0
        %1148 = vmatprep.subr.mxu0 0.0
        %1149 = vmatpush1.msra.mxu0 0.0
        %1150 = vmatprep.subr.mxu0 0.0
        %1151 = vmatpush1.msra.mxu0 0.0
        %1152 = vmatprep.subr.mxu0 0.0
        %1153 = vmatpush1.msra.mxu0 0.0
        %1154 = vmatprep.subr.mxu0 0.0
        %1155 = vmatpush1.msra.mxu0 0.0
        %1156 = vmatprep.subr.mxu0 0.0
        %1157 = vmatpush1.msra.mxu0 0.0
        %1158 = vmatprep.subr.mxu0 0.0
        %1159 = vmatpush1.msra.mxu0 0.0
        %1160 = vmatprep.subr.mxu0 0.0
        %1161 = vmatpush1.msra.mxu0 0.0
        %1162 = vmatprep.subr.mxu0 0.0
        %1163 = vmatpush1.msra.mxu0 0.0
        %1164 = vmatprep.subr.mxu0 0.0
        %1165 = vmatpush1.msra.mxu0 0.0
        %1166 = vmatprep.subr.mxu0 0.0
        %1167 = vmatpush1.msra.mxu0 0.0
        %1168 = vmatprep.subr.mxu0 0.0
        %1169 = vmatpush1.msra.mxu0 0.0
        %1170 = vmatprep.subr.mxu0 0.0
        %1171 = vmatpush1.msra.mxu0 0.0
        %1172 = vmatprep.subr.mxu0 0.0
        %1173 = vmatpush1.msra.mxu0 0.0
        %1174 = vmatprep.subr.mxu0 0.0
        %1175 = vmatpush1.msra.mxu0 0.0
        %1176 = vmatprep.subr.mxu0 0.0
        %1177 = vmatpush1.msra.mxu0 0.0
        %1178 = vmatprep.subr.mxu0 0.0
        %1179 = vmatpush1.msra.mxu0 0.0
        %1180 = vmatprep.subr.mxu0 0.0
        %1181 = vmatpush1.msra.mxu0 0.0
        %1182 = vmatprep.mubr.f32.mxu0 0.0
        %1183 = vmatmul.mubr.f32.gmra.mrb[0].mxu0 %v1045
        %v1184 = vpop.f32.mrb[0].mxu0
        %v1185 = vadd.f32 %v1042, %v1184
        %v1186 = vpop.f32.mrb[0].mxu0
        %v1187 = vadd.f32 %v1042, %v1186
        %1188 = vdwg.mxu0
        %1189 = vst [vmem:[%s260] sm:$0xff] %v1114
        %1190 = vst [vmem:[%s260 + $0x8] sm:$0xff] %v1116
        %1191 = vst [vmem:[%s260 + $0x10] sm:$0xff] %v1185
        %1192 = vst [vmem:[%s260 + $0x18] sm:$0xff] %v1187
        %s1193 = smul.u32 4, %s22
        %p1194 = scmp.lt.s32.totalorder %s23, 1
        %s1195 = scalar_select %p1194, %s23, 1
        %p1196 = scmp.lt.s32.totalorder %s1193, 15
        %s1197 = scalar_select %p1196, %s1193, 15
        %s1198 = smul.addr %s1195, 16
        %s1199 = sadd.s32 %s1197, %s1198
        %s1200 = smul.addr %s1199, 8
        %s1201 = scalar_lea.vmem %s4, %s1200
        // Predicated region
        $region41: #{decode.1} parent=35 // pred_check
          %p1202 = pneg %p144
        $region42: #{decode.1} parent=35 // pred_check_branch
          %1204 = sbr.rel (%p1202) target = $region44
        $region43: #{decode.1} parent=35 // pred_region
          %s1205 = smul.u32 4, %s22
        $region44: #{decode.1} parent=35 // pred_fallthru
          _
      $region36: #{decode.1} parent=5 // pred_fallthru
        _
      %p1206 = scmp.le.s32.totalorder 2, %s13
      // Predicated region
      $region45: #{decode.1} parent=5 // pred_check
        %p1207 = pneg %p1206
      $region46: #{decode.1} parent=5 // pred_check_branch
        %1209 = sbr.rel (%p1207) target = $region48
      $region47: #{decode.1} parent=5 // pred_region
        %s1210 = ssub.s32 %s13, 2
        // Predicated region
        $region49: #{decode.1} parent=47 // pred_check
          %p1211 = pneg %p150
        $region50: #{decode.1} parent=47 // pred_check_branch
          %1213 = sbr.rel (%p1211) target = $region52
        $region51: #{decode.1} parent=47 // pred_region
          %s1214 = smul.u32 4, %s24
          %p1215 = scmp.lt.s32.totalorder %s25, 1
          %s1216 = scalar_select %p1215, %s25, 1
          %p1217 = scmp.lt.s32.totalorder %s1214, 15
          %s1218 = scalar_select %p1217, %s1214, 15
          %s1219 = smul.addr %s1216, 16
          %s1220 = sadd.s32 %s1218, %s1219
          %s1221 = smul.addr %s1220, 8
          %s1222 = scalar_lea.vmem %s4, %s1221
        $region52: #{decode.1} parent=47 // pred_fallthru
          _
      $region48: #{decode.1} parent=5 // pred_fallthru
        _
    $region6: #{decode.1} parent=1 // loop_footer
      %s17 = sadd.s32 1, %s13
    $region7: #{decode.1} parent=1 // loop_footer_branch
      %12 = sbr.rel target = $region3
    $region8: #{decode.1} parent=1 // loop_exit
      _
    %1223 = vsyncpa [#allocation3], 1
    %s1224 = scalar_lea.sflag [#allocation3], 1
    %1225 = vsyncpa %s1224, 1

</llo_original>
